<compile_context>
chip_gen: v7x
topology: tpu7x:2x2x1
jax: 0.10.0
libtpu: 0.0.40
codegen_flags: <defaults>
</compile_context>

<pallas_src>
import functools

import jax
import jax.numpy as jnp
from jax.experimental import pallas as pl
from jax.experimental.pallas import tpu as pltpu


OUT_LANES = 8       # padded output width (real outputs = first 3 columns)
NEG_BIG = -1e30     # padded-logit bias -> exp underflows to exactly 0 in f32


def ssl3d_kernel(h_ref, mask_ref, w1_ref, b1_ref, w2_ref, b2_ref, out_ref):
    # node_dec: Linear(H, H) on the MXU (bf16 inputs, f32 accumulate) + SiLU (f32).
    h = h_ref[...].astype(jnp.bfloat16)                              # (tm, H)
    z = jnp.dot(h, w1_ref[...],
                preferred_element_type=jnp.float32) + b1_ref[...]    # (tm, H) f32
    z = z * jax.nn.sigmoid(z)                                        # SiLU

    # node mask, broadcast over the hidden lanes.
    z = z * mask_ref[...]                                            # (tm, H) * (tm, 1)

    # pre_ra: Linear(H, 3) padded to OUT_LANES columns (zero weights, -1e30 bias).
    logits = jnp.dot(z.astype(jnp.bfloat16), w2_ref[...],
                     preferred_element_type=jnp.float32) + b2_ref[...]   # (tm, 8) f32

    # Row softmax; padded lanes have logits == -1e30 -> exp == 0, so the max/sum
    # over all 8 lanes equals the max/sum over the 3 real columns. Exact divide
    # keeps rows summing to 1 to f32 precision.
    m = jnp.max(logits, axis=-1, keepdims=True)
    e = jnp.exp(logits - m)
    denom = jnp.sum(e, axis=-1, keepdims=True)
    out_ref[...] = (e / denom).astype(out_ref.dtype)


def _round_up(x, m):
    return ((x + m - 1) // m) * m


def _ceil_div(a, b):
    return -(-a // b)


def _plan_rows(n_rows, tm_max):
    """Pick (padded_rows, row_tile). Keeps padding small; >=4 tiles for large N (v7x)."""
    np8 = _round_up(n_rows, 8)
    if np8 <= tm_max:
        return np8, np8                      # single tile, no extra waste
    num_tiles = max(4, _ceil_div(np8, tm_max))
    tm = _round_up(_ceil_div(np8, num_tiles), 8)
    np_pad = tm * _ceil_div(np8, tm)
    return np_pad, tm


@functools.partial(jax.jit, static_argnames=("n_nodes", "tm_max"))
def ssl3d_forward(h, node_mask, n_nodes, params, *, tm_max=1024):
    """h: (N, H) f32, node_mask: (N, 1) f32 -> (N // n_nodes, n_nodes, 3) f32."""
    N, H = h.shape
    w1, b1, w2, b2 = params                      # (H,H), (1,H), (H,3), (1,3) f32

    Np, tm = _plan_rows(N, tm_max)

    # Row padding only when needed (zero rows -> softmax(b2), sliced away below).
    if Np == N:
        h_p, mask_p = h, node_mask
    else:
        h_p = jnp.zeros((Np, H), h.dtype).at[:N, :].set(h)
        mask_p = jnp.zeros((Np, 1), node_mask.dtype).at[:N, :].set(node_mask)

    # Weight-side prep is tiny (done once per call): bf16 weights, padded pre_ra.
    w1_b = w1.astype(jnp.bfloat16)                                        # (H, H)
    b1_f = b1.astype(jnp.float32)                                         # (1, H)
    w2_p = jnp.zeros((H, OUT_LANES), jnp.bfloat16).at[:, :3].set(w2.astype(jnp.bfloat16))
    b2_p = jnp.full((1, OUT_LANES), NEG_BIG, jnp.float32).at[:, :3].set(b2)

    cost = pl.CostEstimate(
        flops=2 * Np * H * H + 2 * Np * H * OUT_LANES,
        transcendentals=Np * H + Np * OUT_LANES,              # sigmoid + exp
        bytes_accessed=(Np * H * 4 + Np * 4                   # h, mask reads
                        + H * H * 2 + H * 4                   # W1, b1
                        + H * OUT_LANES * 2 + OUT_LANES * 4   # W2, b2
                        + Np * OUT_LANES * 4),                # output write
    )

    out_pad = pl.pallas_call(
        ssl3d_kernel,
        out_shape=jax.ShapeDtypeStruct((Np, OUT_LANES), jnp.float32),
        grid_spec=pltpu.PrefetchScalarGridSpec(
            num_scalar_prefetch=0,
            grid=(Np // tm,),
            in_specs=[
                pl.BlockSpec((tm, H), lambda i: (i, 0)),            # h rows (native f32)
                pl.BlockSpec((tm, 1), lambda i: (i, 0)),            # node_mask rows
                pl.BlockSpec((H, H), lambda i: (0, 0)),             # W1 (resident, bf16)
                pl.BlockSpec((1, H), lambda i: (0, 0)),             # b1 (f32)
                pl.BlockSpec((H, OUT_LANES), lambda i: (0, 0)),     # W2 (padded, bf16)
                pl.BlockSpec((1, OUT_LANES), lambda i: (0, 0)),     # b2 (padded, f32)
            ],
            out_specs=pl.BlockSpec((tm, OUT_LANES), lambda i: (i, 0)),
        ),
        compiler_params=pltpu.CompilerParams(
            dimension_semantics=("parallel",),
        ),
        cost_estimate=cost,
    )(h_p, mask_p, w1_b, b1_f, w2_p, b2_p)

    # Drop row/lane padding, then apply the .view(-1, n_nodes, hidden) reshape.
    return out_pad[:N, :3].reshape(-1, n_nodes, 3)


def init_params(key, hidden_nf):
    """Deterministic synthetic init matching nn.Linear shapes (weights stored transposed)."""
    k1, k2, k3, k4 = jax.random.split(key, 4)
    scale1 = 1.0 / jnp.sqrt(hidden_nf)
    w1 = jax.random.uniform(k1, (hidden_nf, hidden_nf), jnp.float32, -scale1, scale1)
    b1 = jax.random.uniform(k2, (1, hidden_nf), jnp.float32, -scale1, scale1)
    w2 = jax.random.uniform(k3, (hidden_nf, 3), jnp.float32, -scale1, scale1)
    b2 = jax.random.uniform(k4, (1, 3), jnp.float32, -scale1, scale1)
    return w1, b1, w2, b2


def ssl3d_reference(h, node_mask, n_nodes, params):
    """Pure-JAX f32 reference for correctness check."""
    w1, b1, w2, b2 = params
    z = h @ w1 + b1
    z = z * jax.nn.sigmoid(z)
    z = z * node_mask
    z = z.reshape(-1, n_nodes, h.shape[-1])
    logits = z @ w2 + b2
    return jax.nn.softmax(logits, axis=2)


if __name__ == "__main__":
    hidden_nf = 32
    batch = 2
    n_nodes = 8
    N = batch * n_nodes

    key = jax.random.PRNGKey(0)
    k_h, k_m, k_p = jax.random.split(key, 3)

    h = jax.random.normal(k_h, (N, hidden_nf), jnp.float32)
    node_mask = (jax.random.uniform(k_m, (N, 1)) > 0.2).astype(jnp.float32)
    params = init_params(k_p, hidden_nf)

    out = ssl3d_forward(h, node_mask, n_nodes, params)
    out = jax.block_until_ready(out)

    ref = ssl3d_reference(h, node_mask, n_nodes, params)
    assert out.shape == (batch, n_nodes, 3)
    # Tolerance accounts for bf16 MXU inputs (elementwise + softmax math is f32).
    assert jnp.allclose(out, ref, atol=2e-2, rtol=0.0), "mismatch vs reference"
    assert jnp.allclose(out.sum(-1), 1.0, atol=1e-3), "softmax rows do not sum to 1"

    print("KERNEL_OK")
</pallas_src>

<mosaic_0001>
module attributes {stable_mosaic.version = 11 : i64} {
  func.func @ssl3d_kernel(%arg0: i32, %arg1: memref<16x32xf32, #tpu.memory_space<vmem>>, %arg2: memref<16x1xf32, #tpu.memory_space<vmem>>, %arg3: memref<32x32xbf16, #tpu.memory_space<vmem>>, %arg4: memref<1x32xf32, #tpu.memory_space<vmem>>, %arg5: memref<32x8xbf16, #tpu.memory_space<vmem>>, %arg6: memref<1x8xf32, #tpu.memory_space<vmem>>, %arg7: memref<16x8xf32, #tpu.memory_space<vmem>>) attributes {dimension_semantics = [#tpu.dimension_semantics<parallel>], iteration_bounds = array<i64: 1>, scalar_prefetch = 0 : i64, scratch_operands = 0 : i64, tpu.core_type = #tpu.core_type<tc>, window_params = [{transform_indices = @transform_0, window_bounds = array<i64: 16, 32>}, {transform_indices = @transform_1, window_bounds = array<i64: 16, 1>}, {pipeline_mode = #tpu.pipeline_mode<synchronous>, transform_indices = @transform_2, window_bounds = array<i64: 32, 32>}, {pipeline_mode = #tpu.pipeline_mode<synchronous>, transform_indices = @transform_3, window_bounds = array<i64: 1, 32>}, {pipeline_mode = #tpu.pipeline_mode<synchronous>, transform_indices = @transform_4, window_bounds = array<i64: 32, 8>}, {pipeline_mode = #tpu.pipeline_mode<synchronous>, transform_indices = @transform_5, window_bounds = array<i64: 1, 8>}, {transform_indices = @transform_6, window_bounds = array<i64: 16, 8>}]} {
    %c0 = arith.constant 0 : index
    %c0_0 = arith.constant 0 : index
    %0 = vector.load %arg1[%c0, %c0_0] : memref<16x32xf32, #tpu.memory_space<vmem>>, vector<16x32xf32>
    %1 = arith.truncf %0 : vector<16x32xf32> to vector<16x32xbf16>
    %c0_1 = arith.constant 0 : index
    %c0_2 = arith.constant 0 : index
    %2 = vector.load %arg3[%c0_1, %c0_2] : memref<32x32xbf16, #tpu.memory_space<vmem>>, vector<32x32xbf16>
    %cst = arith.constant dense<0.000000e+00> : vector<16x32xf32>
    %3 = tpu.matmul %1, %2, %cst {dimension_numbers = #tpu.dot_dimension_numbers<[1], [0], [0], [1], [0, 0, 1, 1], [], []>} : vector<16x32xbf16>, vector<32x32xbf16>, vector<16x32xf32> -> vector<16x32xf32>
    %c0_3 = arith.constant 0 : index
    %c0_4 = arith.constant 0 : index
    %4 = vector.load %arg4[%c0_3, %c0_4] : memref<1x32xf32, #tpu.memory_space<vmem>>, vector<1x32xf32>
    %5 = vector.broadcast %4 : vector<1x32xf32> to vector<16x32xf32>
    %6 = arith.addf %3, %5 : vector<16x32xf32>
    %7 = arith.negf %6 : vector<16x32xf32>
    %8 = math.exp %7 : vector<16x32xf32>
    %cst_5 = arith.constant 1.000000e+00 : f32
    %9 = vector.broadcast %cst_5 : f32 to vector<16x32xf32>
    %10 = arith.addf %9, %8 : vector<16x32xf32>
    %11 = arith.divf %9, %10 : vector<16x32xf32>
    %12 = arith.mulf %6, %11 : vector<16x32xf32>
    %c0_6 = arith.constant 0 : index
    %c0_7 = arith.constant 0 : index
    %13 = vector.load %arg2[%c0_6, %c0_7] : memref<16x1xf32, #tpu.memory_space<vmem>>, vector<16x1xf32>
    %14 = vector.broadcast %13 : vector<16x1xf32> to vector<16x32xf32>
    %15 = arith.mulf %12, %14 : vector<16x32xf32>
    %16 = arith.truncf %15 : vector<16x32xf32> to vector<16x32xbf16>
    %c0_8 = arith.constant 0 : index
    %c0_9 = arith.constant 0 : index
    %17 = vector.load %arg5[%c0_8, %c0_9] : memref<32x8xbf16, #tpu.memory_space<vmem>>, vector<32x8xbf16>
    %cst_10 = arith.constant dense<0.000000e+00> : vector<16x8xf32>
    %18 = tpu.matmul %16, %17, %cst_10 {dimension_numbers = #tpu.dot_dimension_numbers<[1], [0], [0], [1], [0, 0, 1, 1], [], []>} : vector<16x32xbf16>, vector<32x8xbf16>, vector<16x8xf32> -> vector<16x8xf32>
    %c0_11 = arith.constant 0 : index
    %c0_12 = arith.constant 0 : index
    %19 = vector.load %arg6[%c0_11, %c0_12] : memref<1x8xf32, #tpu.memory_space<vmem>>, vector<1x8xf32>
    %20 = vector.broadcast %19 : vector<1x8xf32> to vector<16x8xf32>
    %21 = arith.addf %18, %20 : vector<16x8xf32>
    %cst_13 = arith.constant dense<0xFF800000> : vector<16xf32>
    %22 = vector.multi_reduction <maximumf>, %21, %cst_13 [1] : vector<16x8xf32> to vector<16xf32>
    %23 = vector.shape_cast %22 : vector<16xf32> to vector<16x1xf32>
    %24 = vector.broadcast %23 : vector<16x1xf32> to vector<16x8xf32>
    %25 = arith.subf %21, %24 : vector<16x8xf32>
    %26 = math.exp %25 : vector<16x8xf32>
    %cst_14 = arith.constant dense<0.000000e+00> : vector<16xf32>
    %27 = vector.multi_reduction <add>, %26, %cst_14 [1] : vector<16x8xf32> to vector<16xf32>
    %28 = vector.shape_cast %27 : vector<16xf32> to vector<16x1xf32>
    %29 = vector.broadcast %28 : vector<16x1xf32> to vector<16x8xf32>
    %30 = arith.divf %26, %29 : vector<16x8xf32>
    %c0_15 = arith.constant 0 : index
    %c0_16 = arith.constant 0 : index
    %31 = vector.load %arg7[%c0_15, %c0_16] : memref<16x8xf32, #tpu.memory_space<vmem>>, vector<16x8xf32>
    tpu.vector_store %arg7[%c0_15, %c0_16], %30 {strides = array<i32>} : memref<16x8xf32, #tpu.memory_space<vmem>>, vector<16x8xf32>,
    return
  }
  func.func @transform_0(%arg0: i32) -> (i32, i32) {
    %c0_i32 = arith.constant 0 : i32
    %c0_i32_0 = arith.constant 0 : i32
    return %arg0, %c0_i32 : i32, i32
  }
  func.func @transform_1(%arg0: i32) -> (i32, i32) {
    %c0_i32 = arith.constant 0 : i32
    %c0_i32_0 = arith.constant 0 : i32
    return %arg0, %c0_i32 : i32, i32
  }
  func.func @transform_2(%arg0: i32) -> (i32, i32) {
    %c0_i32 = arith.constant 0 : i32
    %c0_i32_0 = arith.constant 0 : i32
    %c0_i32_1 = arith.constant 0 : i32
    return %c0_i32, %c0_i32_0 : i32, i32
  }
  func.func @transform_3(%arg0: i32) -> (i32, i32) {
    %c0_i32 = arith.constant 0 : i32
    %c0_i32_0 = arith.constant 0 : i32
    %c0_i32_1 = arith.constant 0 : i32
    return %c0_i32, %c0_i32_0 : i32, i32
  }
  func.func @transform_4(%arg0: i32) -> (i32, i32) {
    %c0_i32 = arith.constant 0 : i32
    %c0_i32_0 = arith.constant 0 : i32
    %c0_i32_1 = arith.constant 0 : i32
    return %c0_i32, %c0_i32_0 : i32, i32
  }
  func.func @transform_5(%arg0: i32) -> (i32, i32) {
    %c0_i32 = arith.constant 0 : i32
    %c0_i32_0 = arith.constant 0 : i32
    %c0_i32_1 = arith.constant 0 : i32
    return %c0_i32, %c0_i32_0 : i32, i32
  }
  func.func @transform_6(%arg0: i32) -> (i32, i32) {
    %c0_i32 = arith.constant 0 : i32
    %c0_i32_0 = arith.constant 0 : i32
    return %arg0, %c0_i32 : i32, i32
  }
}

</mosaic_0001>

<llo_original>
// kernel: ssl3d_forward.1
$region0: #{ssl3d_forward.1}
  #allocation0 [shape = 'u32[]', space=smem, size = 0x4, offset = 0x4, fixed_abs, tag = 'smem constant byte address 0x4 - core index']
  #allocation1 [shape = 'u32[144,128]{1,0:T(1,128)}', space=vmem, size = 0x12000, scoped, tag = 'internal scratch']
  %s0 = inlined_call_operand.vmem [shape: f32[16,32], index: 0, kind: input, shape index: {}]
  %s1 = inlined_call_operand.vmem [shape: f32[16,1], index: 1, kind: input, shape index: {}]
  %s2 = inlined_call_operand.vmem [shape: bf16[32,32], index: 2, kind: input, shape index: {}]
  %s3 = inlined_call_operand.vmem [shape: f32[1,32], index: 3, kind: input, shape index: {}]
  %s4 = inlined_call_operand.vmem [shape: bf16[32,8], index: 4, kind: input, shape index: {}]
  %s5 = inlined_call_operand.vmem [shape: f32[1,8], index: 5, kind: input, shape index: {}]
  %s6 = inlined_call_operand.vmem [shape: f32[16,8], index: 6, kind: output, shape index: {}]
  %s7 = sld [smem:[#allocation0]]
  $region34: #{ssl3d_forward.1} parent=0
    _
  %s9 = ssub.s32 1, %s7
  %s10 = scalar_select 0, %s9, %s7
  // Predicated region
  $region2: #{ssl3d_forward.1} parent=0 // pred_check
    _
  $region3: #{ssl3d_forward.1} parent=0 // pred_check_branch
    %12 = sbr.rel (0) target = $region5
  $region4: #{ssl3d_forward.1} parent=0 // pred_region
    _
  $region5: #{ssl3d_forward.1} parent=0 // pred_fallthru
    _
  // Predicated region
  $region6: #{ssl3d_forward.1} parent=0 // pred_check
    _
  $region7: #{ssl3d_forward.1} parent=0 // pred_check_branch
    %14 = sbr.rel (0) target = $region9
  $region8: #{ssl3d_forward.1} parent=0 // pred_region
    _
  $region9: #{ssl3d_forward.1} parent=0 // pred_fallthru
    _
  // Predicated region
  $region10: #{ssl3d_forward.1} parent=0 // pred_check
    _
  $region11: #{ssl3d_forward.1} parent=0 // pred_check_branch
    %16 = sbr.rel (0) target = $region13
  $region12: #{ssl3d_forward.1} parent=0 // pred_region
    _
  $region13: #{ssl3d_forward.1} parent=0 // pred_fallthru
    _
  // Predicated region
  $region14: #{ssl3d_forward.1} parent=0 // pred_check
    _
  $region15: #{ssl3d_forward.1} parent=0 // pred_check_branch
    %18 = sbr.rel (0) target = $region17
  $region16: #{ssl3d_forward.1} parent=0 // pred_region
    _
  $region17: #{ssl3d_forward.1} parent=0 // pred_fallthru
    _
  // Predicated region
  $region18: #{ssl3d_forward.1} parent=0 // pred_check
    _
  $region19: #{ssl3d_forward.1} parent=0 // pred_check_branch
    %20 = sbr.rel (0) target = $region21
  $region20: #{ssl3d_forward.1} parent=0 // pred_region
    _
  $region21: #{ssl3d_forward.1} parent=0 // pred_fallthru
    _
  // Predicated region
  $region22: #{ssl3d_forward.1} parent=0 // pred_check
    _
  $region23: #{ssl3d_forward.1} parent=0 // pred_check_branch
    %22 = sbr.rel (0) target = $region25
  $region24: #{ssl3d_forward.1} parent=0 // pred_region
    _
  $region25: #{ssl3d_forward.1} parent=0 // pred_fallthru
    _
  %v24 = vld [vmem:[%s0] sm:$0xff]
  %v25 = vld [vmem:[%s0 + $0x8] sm:$0xff]
  %v26 = vpack.c.bf16 %v25, %v24
  %v27 = vld [vmem:[%s2] sm:$0xf]
  %v28 = vld [vmem:[%s2 + $0x4] sm:$0xf]
  %v29 = vld [vmem:[%s2 + $0x8] sm:$0xf]
  %v30 = vld [vmem:[%s2 + $0xc] sm:$0xf]
  %v31 = vld [vmem:[%s3] sm:$0x1]
  %v33 = vlaneseq
  %v34 = vshrl.u32 %v33, 7
  %v35 = vsub.s32 0, %v34
  %v36 = vrot.slane %v31, %v35
  %v42 = vunpack.c.l.b16 %v27
  %v43 = vunpack.c.l.b16 %v28
  %v44 = vunpack.c.l.b16 %v29
  %v45 = vunpack.c.l.b16 %v30
  %v46 = vpack.c.b16 %v43, %v42
  %v47 = vpack.c.b16 %v45, %v44
  %vm50 = vcmask 261120
  %v52 = vsel %vm50, %v26, 0
  %54 = vmatprep.subr.bf16.mxu0 0
  %55 = vmatpush1.bf16.msra.mxu0 %v46
  %56 = vmatprep.subr.bf16.mxu0 0
  %57 = vmatpush1.bf16.msra.mxu0 %v47
  %58 = vmatprep.subr.bf16.mxu0 0
  %59 = vmatpush1.bf16.msra.mxu0 0
  %60 = vmatprep.subr.bf16.mxu0 0
  %61 = vmatpush1.bf16.msra.mxu0 0
  %62 = vmatprep.subr.bf16.mxu0 0
  %63 = vmatpush1.bf16.msra.mxu0 0
  %64 = vmatprep.subr.bf16.mxu0 0
  %65 = vmatpush1.bf16.msra.mxu0 0
  %66 = vmatprep.subr.bf16.mxu0 0
  %67 = vmatpush1.bf16.msra.mxu0 0
  %68 = vmatprep.subr.bf16.mxu0 0
  %69 = vmatpush1.bf16.msra.mxu0 0
  %70 = vmatprep.subr.bf16.mxu0 0
  %71 = vmatpush1.bf16.msra.mxu0 0
  %72 = vmatprep.subr.bf16.mxu0 0
  %73 = vmatpush1.bf16.msra.mxu0 0
  %74 = vmatprep.subr.bf16.mxu0 0
  %75 = vmatpush1.bf16.msra.mxu0 0
  %76 = vmatprep.subr.bf16.mxu0 0
  %77 = vmatpush1.bf16.msra.mxu0 0
  %78 = vmatprep.subr.bf16.mxu0 0
  %79 = vmatpush1.bf16.msra.mxu0 0
  %80 = vmatprep.subr.bf16.mxu0 0
  %81 = vmatpush1.bf16.msra.mxu0 0
  %82 = vmatprep.subr.bf16.mxu0 0
  %83 = vmatpush1.bf16.msra.mxu0 0
  %84 = vmatprep.subr.bf16.mxu0 0
  %85 = vmatpush1.bf16.msra.mxu0 0
  %86 = vmatprep.mubr.bf16.mxu0 0
  %87 = vmatmul.mubr.bf16.gmra.mrb[0].mxu0 %v52
  %v88 = vpop.f32.mrb[0].mxu0
  %v89 = vadd.f32 %v36, %v88
  %v90 = vpop.f32.mrb[0].mxu0
  %v91 = vpop.f32.mrb[0].mxu0
  %v92 = vadd.f32 %v36, %v91
  %v93 = vpop.f32.mrb[0].mxu0
  %94 = vdwg.mxu0
  %v95 = vxor.u32 %v89, 2147483648
  %v96 = vxor.u32 %v92, 2147483648
  %v97 = vmul.f32 %v95, 1.442695
  %v98 = vpow.pop %v97
  %v99 = vmul.f32 %v96, 1.442695
  %v100 = vpow.pop %v99
  %v101 = vadd.f32 %v98, 1.0
  %v102 = vadd.f32 %v100, 1.0
  %v103 = vrcp.pop %v101
  %v104 = vmul.f32 1.0, %v103
  %v105 = vrcp.pop %v102
  %v106 = vmul.f32 1.0, %v105
  %v107 = vmul.f32 %v89, %v104
  %v108 = vmul.f32 %v92, %v106
  %v109 = vld [vmem:[%s1] sm:$0xff]
  %v110 = vld [vmem:[%s1 + $0x8] sm:$0xff]
  %112 = vset.pattern.permute.xlu0 0
  %113 = vperm.xlu0 %112, %v109
  %v114 = vpop.permute.xlu0 %113
  %117 = vset.pattern.permute.xlu0 0
  %118 = vperm.xlu0 %117, %v110
  %v119 = vpop.permute.xlu0 %118
  %v121 = vmul.f32 %v107, %v114
  %v122 = vmul.f32 %v108, %v119
  %v123 = vpack.c.bf16 %v122, %v121
  %v124 = vld [vmem:[%s4] sm:$0xf]
  %v125 = vld [vmem:[%s4 + $0x4] sm:$0xf]
  %v126 = vld [vmem:[%s4 + $0x8] sm:$0xf]
  %v127 = vld [vmem:[%s4 + $0xc] sm:$0xf]
  %v128 = vld [vmem:[%s5] sm:$0x1]
  %v130 = vlaneseq
  %v131 = vshrl.u32 %v130, 7
  %v132 = vsub.s32 0, %v131
  %v133 = vrot.slane %v128, %v132
  %v139 = vunpack.c.l.b16 %v124
  %v140 = vunpack.c.l.b16 %v125
  %v141 = vunpack.c.l.b16 %v126
  %v142 = vunpack.c.l.b16 %v127
  %v143 = vpack.c.b16 %v140, %v139
  %v144 = vpack.c.b16 %v142, %v141
  %v148 = vsel %vm50, %v123, 0
  %150 = vmatprep.subr.bf16.mxu0 0
  %151 = vmatpush1.bf16.msra.mxu0 %v143
  %152 = vmatprep.subr.bf16.mxu0 0
  %153 = vmatpush1.bf16.msra.mxu0 %v144
  %154 = vmatprep.subr.bf16.mxu0 0
  %155 = vmatpush1.bf16.msra.mxu0 0
  %156 = vmatprep.subr.bf16.mxu0 0
  %157 = vmatpush1.bf16.msra.mxu0 0
  %158 = vmatprep.subr.bf16.mxu0 0
  %159 = vmatpush1.bf16.msra.mxu0 0
  %160 = vmatprep.subr.bf16.mxu0 0
  %161 = vmatpush1.bf16.msra.mxu0 0
  %162 = vmatprep.subr.bf16.mxu0 0
  %163 = vmatpush1.bf16.msra.mxu0 0
  %164 = vmatprep.subr.bf16.mxu0 0
  %165 = vmatpush1.bf16.msra.mxu0 0
  %166 = vmatprep.subr.bf16.mxu0 0
  %167 = vmatpush1.bf16.msra.mxu0 0
  %168 = vmatprep.subr.bf16.mxu0 0
  %169 = vmatpush1.bf16.msra.mxu0 0
  %170 = vmatprep.subr.bf16.mxu0 0
  %171 = vmatpush1.bf16.msra.mxu0 0
  %172 = vmatprep.subr.bf16.mxu0 0
  %173 = vmatpush1.bf16.msra.mxu0 0
  %174 = vmatprep.subr.bf16.mxu0 0
  %175 = vmatpush1.bf16.msra.mxu0 0
  %176 = vmatprep.subr.bf16.mxu0 0
  %177 = vmatpush1.bf16.msra.mxu0 0
  %178 = vmatprep.subr.bf16.mxu0 0
  %179 = vmatpush1.bf16.msra.mxu0 0
  %180 = vmatprep.subr.bf16.mxu0 0
  %181 = vmatpush1.bf16.msra.mxu0 0
  %182 = vmatprep.mubr.bf16.mxu0 0
  %183 = vmatmul.mubr.bf16.gmra.mrb[0].mxu0 %v148
  %v184 = vpop.f32.mrb[0].mxu0
  %v185 = vadd.f32 %v133, %v184
  %v186 = vpop.f32.mrb[0].mxu0
  %v187 = vpop.f32.mrb[0].mxu0
  %v188 = vadd.f32 %v133, %v187
  %v189 = vpop.f32.mrb[0].mxu0
  %190 = vdwg.mxu0
  %vm191 = vcmask 64512
  %v192 = vsel %vm191, %v185, -inf
  %193 = vmax.xlane.f32.xlu0 %v192
  %v194 = vpop.xlane.xlu0 %193
  %v195 = vsel %vm191, %v188, -inf
  %196 = vmax.xlane.f32.xlu0 %v195
  %v197 = vpop.xlane.xlu0 %196
  %v198 = vsub.f32 %v185, %v194
  %v199 = vsub.f32 %v188, %v197
  %v200 = vmul.f32 %v198, 1.442695
  %v201 = vpow.pop %v200
  %v202 = vmul.f32 %v199, 1.442695
  %v203 = vpow.pop %v202
  %v204 = vsel %vm191, %v201, 0.0
  %205 = vadd.xlane.f32.xlu0 %v204
  %v206 = vpop.xlane.xlu0 %205
  %v207 = vsel %vm191, %v203, 0.0
  %208 = vadd.xlane.f32.xlu0 %v207
  %v209 = vpop.xlane.xlu0 %208
  %v210 = vrcp.pop %v206
  %v211 = vmul.f32 %v201, %v210
  %v212 = vrcp.pop %v209
  %v213 = vmul.f32 %v203, %v212
  %214 = vst.msk [vmem:[%s6] sm:$0xff] %vm191, %v211
  %215 = vst.msk [vmem:[%s6 + $0x8] sm:$0xff] %vm191, %v213
  // Predicated region
  $region26: #{ssl3d_forward.1} parent=0 // pred_check
    _
  $region27: #{ssl3d_forward.1} parent=0 // pred_check_branch
    %217 = sbr.rel (0) target = $region29
  $region28: #{ssl3d_forward.1} parent=0 // pred_region
    _
  $region29: #{ssl3d_forward.1} parent=0 // pred_fallthru
    _
  // Predicated region
  $region30: #{ssl3d_forward.1} parent=0 // pred_check
    _
  $region31: #{ssl3d_forward.1} parent=0 // pred_check_branch
    %219 = sbr.rel (0) target = $region33
  $region32: #{ssl3d_forward.1} parent=0 // pred_region
    _
  $region33: #{ssl3d_forward.1} parent=0 // pred_fallthru
    _

</llo_original>
